<compile_context>
chip_gen: v5e
topology: v5e:2x2
jax: 0.10.0
libtpu: 0.0.40
codegen_flags: <defaults>
</compile_context>

<pallas_src>
import functools

import jax
import jax.numpy as jnp
from jax.experimental import pallas as pl
from jax.experimental.pallas import tpu as pltpu


# ---------------------------------------------------------------------------
# Kernels
# ---------------------------------------------------------------------------

def _mean_pool_kernel(x_ref, o_ref, acc_ref, *, seq_len, seq_tile, needs_mask):
    """Accumulate a partial sum over one (TB, tS, D) sequence tile."""
    k = pl.program_id(1)

    @pl.when(k == 0)
    def _init():
        acc_ref[...] = jnp.zeros_like(acc_ref)

    x = x_ref[...]  # (TB, tS, D) in the input dtype (no full-block f32 blowup)
    if needs_mask:
        # Mask sequence positions past the real length (padded last tile).
        pos = k * seq_tile + jax.lax.broadcasted_iota(
            jnp.int32, (1, x.shape[1], 1), 1)
        x = jnp.where(pos < seq_len, x, jnp.zeros((), x.dtype))
    # Per-tile VPU reduction, accumulated in f32 scratch.
    acc_ref[...] += jnp.sum(x, axis=1, dtype=jnp.float32)

    @pl.when(k == pl.num_programs(1) - 1)
    def _finalize():
        o_ref[...] = (acc_ref[...] * (1.0 / seq_len)).astype(o_ref.dtype)


def _cls_pool_kernel(x_ref, o_ref):
    # x_ref: (TB, 1, D) -- only sequence position 0 was DMA'd from HBM.
    o_ref[...] = x_ref[:, 0, :]


# ---------------------------------------------------------------------------
# Tiling heuristics
# ---------------------------------------------------------------------------

def _pick_batch_tile(batch: int) -> int:
    if batch <= 8:
        return batch
    for tb in (64, 32, 16, 8):
        if batch % tb == 0:
            return tb
    return 8  # last block padded; padded output rows are dropped on writeback


def _pick_seq_tile(seq: int, row_bytes: int, target_bytes: int = 2 << 20) -> int:
    """Largest seq tile (multiple of 8, preferably dividing S) near target_bytes.

    ~2 MiB per (double-buffered) input block keeps the pipeline at the HBM
    roofline while staying well inside the scoped VMEM defaults on
    v5e (16 MiB), v6e (32 MiB) and v7x (32 MiB scoped / 64 MiB physical).
    """
    max_rows = max(8, target_bytes // max(1, row_bytes))
    if seq <= max_rows:
        return seq
    top = max(8, (max_rows // 8) * 8)
    for cand in range(top, 7, -8):
        if seq % cand == 0:
            return cand
    return top  # falls back to in-kernel masking on the last tile


# ---------------------------------------------------------------------------
# Wrapper
# ---------------------------------------------------------------------------

def pooling(x: jax.Array, pool: str = "mean") -> jax.Array:
    """Equivalent of DKDMN.Pooling(pool).forward(x) for x of shape (B, S, D)."""
    if pool not in ("mean", "cls"):
        raise ValueError("pool must be one of {mean, cls}")
    B, S, D = x.shape
    itemsize = jnp.dtype(x.dtype).itemsize
    TB = _pick_batch_tile(B)
    nb = pl.cdiv(B, TB)

    if pool == "cls":
        cost = pl.CostEstimate(
            flops=0,
            transcendentals=0,
            bytes_accessed=2 * B * D * itemsize,
        )
        return pl.pallas_call(
            _cls_pool_kernel,
            out_shape=jax.ShapeDtypeStruct((B, D), x.dtype),
            grid_spec=pltpu.PrefetchScalarGridSpec(
                num_scalar_prefetch=0,
                grid=(nb,),
                # Only DMA sequence position 0 -> S-fold less HBM traffic.
                in_specs=[pl.BlockSpec((TB, 1, D), lambda b: (b, 0, 0))],
                out_specs=pl.BlockSpec((TB, D), lambda b: (b, 0)),
            ),
            compiler_params=pltpu.CompilerParams(
                dimension_semantics=("parallel",),
                vmem_limit_bytes=32 * 1024 * 1024,
            ),
            cost_estimate=cost,
        )(x)

    # mean pooling: (batch-tile, seq-tile) grid, seq axis is the reduction.
    tS = _pick_seq_tile(S, TB * D * itemsize)
    ns = pl.cdiv(S, tS)
    needs_mask = (S % tS) != 0
    kernel = functools.partial(
        _mean_pool_kernel, seq_len=S, seq_tile=tS, needs_mask=needs_mask)
    cost = pl.CostEstimate(
        flops=B * S * D,
        transcendentals=0,
        bytes_accessed=B * S * D * itemsize + B * D * itemsize,
    )
    return pl.pallas_call(
        kernel,
        out_shape=jax.ShapeDtypeStruct((B, D), x.dtype),
        grid_spec=pltpu.PrefetchScalarGridSpec(
            num_scalar_prefetch=0,
            grid=(nb, ns),
            in_specs=[pl.BlockSpec((TB, tS, D), lambda b, k: (b, k, 0))],
            out_specs=pl.BlockSpec((TB, D), lambda b, k: (b, 0)),
            scratch_shapes=[pltpu.VMEM((TB, D), jnp.float32)],
        ),
        compiler_params=pltpu.CompilerParams(
            dimension_semantics=("parallel", "arbitrary"),
            vmem_limit_bytes=32 * 1024 * 1024,
        ),
        cost_estimate=cost,
    )(x)


if __name__ == "__main__":
    key = jax.random.PRNGKey(0)
    B, S, D = 2, 8, 32  # batch, seq, hidden (small, matches module defaults)
    x = jax.random.normal(key, (B, S, D), dtype=jnp.float32)

    out_mean = jax.block_until_ready(pooling(x, pool="mean"))
    out_cls = jax.block_until_ready(pooling(x, pool="cls"))

    ref_mean = jnp.mean(x, axis=1)
    ref_cls = x[:, 0]
    assert out_mean.shape == (B, D) and out_cls.shape == (B, D)
    assert jnp.allclose(out_mean, ref_mean, atol=1e-5, rtol=1e-5)
    assert jnp.allclose(out_cls, ref_cls, atol=1e-6, rtol=1e-6)

    # Slightly larger check exercising the batch-tiled, lane-aligned path.
    B2, S2, D2 = 16, 32, 128
    x2 = jax.random.normal(jax.random.PRNGKey(1), (B2, S2, D2), dtype=jnp.float32)
    out2_mean = jax.block_until_ready(pooling(x2, pool="mean"))
    out2_cls = jax.block_until_ready(pooling(x2, pool="cls"))
    assert jnp.allclose(out2_mean, jnp.mean(x2, axis=1), atol=1e-5, rtol=1e-5)
    assert jnp.allclose(out2_cls, x2[:, 0], atol=1e-6, rtol=1e-6)

    print("KERNEL_OK")
</pallas_src>

<mosaic_0001>
module attributes {stable_mosaic.version = 11 : i64} {
  func.func @_mean_pool_kernel(%arg0: i32, %arg1: i32, %arg2: memref<2x8x32xf32, #tpu.memory_space<vmem>>, %arg3: memref<2x32xf32, #tpu.memory_space<vmem>>, %arg4: memref<2x32xf32, #tpu.memory_space<vmem>>) attributes {dimension_semantics = [#tpu.dimension_semantics<parallel>, #tpu.dimension_semantics<arbitrary>], iteration_bounds = array<i64: 1, 1>, scalar_prefetch = 0 : i64, scratch_operands = 1 : i64, tpu.core_type = #tpu.core_type<tc>, window_params = [{transform_indices = @transform_0, window_bounds = array<i64: 2, 8, 32>}, {transform_indices = @transform_1, window_bounds = array<i64: 2, 32>}]} {
    %c0_i32 = arith.constant 0 : i32
    %0 = arith.cmpi eq, %arg1, %c0_i32 : i32
    %1 = arith.extui %0 : i1 to i32
    %c0_i32_0 = arith.constant 0 : i32
    %2 = arith.cmpi ne, %1, %c0_i32_0 : i32
    scf.if %2 {
      %cst_9 = arith.constant 0.000000e+00 : f32
      %11 = vector.broadcast %cst_9 : f32 to vector<2x32xf32>
      %c0_10 = arith.constant 0 : index
      %c0_11 = arith.constant 0 : index
      %12 = vector.load %arg4[%c0_10, %c0_11] : memref<2x32xf32, #tpu.memory_space<vmem>>, vector<2x32xf32>
      tpu.vector_store %arg4[%c0_10, %c0_11], %11 {strides = array<i32>} : memref<2x32xf32, #tpu.memory_space<vmem>>, vector<2x32xf32>,
    } else {
    }
    %c0 = arith.constant 0 : index
    %c0_1 = arith.constant 0 : index
    %c0_2 = arith.constant 0 : index
    %3 = vector.load %arg2[%c0, %c0_1, %c0_2] : memref<2x8x32xf32, #tpu.memory_space<vmem>>, vector<2x8x32xf32>
    %c0_3 = arith.constant 0 : index
    %c0_4 = arith.constant 0 : index
    %4 = vector.load %arg4[%c0_3, %c0_4] : memref<2x32xf32, #tpu.memory_space<vmem>>, vector<2x32xf32>
    %cst = arith.constant dense<0.000000e+00> : vector<2x32xf32>
    %5 = vector.multi_reduction <add>, %3, %cst [1] : vector<2x8x32xf32> to vector<2x32xf32>
    %6 = arith.addf %4, %5 : vector<2x32xf32>
    %c0_5 = arith.constant 0 : index
    %c0_6 = arith.constant 0 : index
    %7 = vector.load %arg4[%c0_5, %c0_6] : memref<2x32xf32, #tpu.memory_space<vmem>>, vector<2x32xf32>
    tpu.vector_store %arg4[%c0_5, %c0_6], %6 {strides = array<i32>} : memref<2x32xf32, #tpu.memory_space<vmem>>, vector<2x32xf32>,
    %c0_i32_7 = arith.constant 0 : i32
    %8 = arith.cmpi eq, %arg1, %c0_i32_7 : i32
    %9 = arith.extui %8 : i1 to i32
    %c0_i32_8 = arith.constant 0 : i32
    %10 = arith.cmpi ne, %9, %c0_i32_8 : i32
    scf.if %10 {
      %c0_9 = arith.constant 0 : index
      %c0_10 = arith.constant 0 : index
      %11 = vector.load %arg4[%c0_9, %c0_10] : memref<2x32xf32, #tpu.memory_space<vmem>>, vector<2x32xf32>
      %cst_11 = arith.constant 1.250000e-01 : f32
      %12 = vector.broadcast %cst_11 : f32 to vector<2x32xf32>
      %13 = arith.mulf %11, %12 : vector<2x32xf32>
      %c0_12 = arith.constant 0 : index
      %c0_13 = arith.constant 0 : index
      %14 = vector.load %arg3[%c0_12, %c0_13] : memref<2x32xf32, #tpu.memory_space<vmem>>, vector<2x32xf32>
      tpu.vector_store %arg3[%c0_12, %c0_13], %13 {strides = array<i32>} : memref<2x32xf32, #tpu.memory_space<vmem>>, vector<2x32xf32>,
    } else {
    }
    return
  }
  func.func @transform_0(%arg0: i32, %arg1: i32) -> (i32, i32, i32) {
    %c0_i32 = arith.constant 0 : i32
    %c0_i32_0 = arith.constant 0 : i32
    return %arg0, %arg1, %c0_i32 : i32, i32, i32
  }
  func.func @transform_1(%arg0: i32, %arg1: i32) -> (i32, i32) {
    %c0_i32 = arith.constant 0 : i32
    %c0_i32_0 = arith.constant 0 : i32
    return %arg0, %c0_i32 : i32, i32
  }
}

</mosaic_0001>

<llo_original>
// kernel: tpu_custom_call.1
$region0: #{tpu_custom_call.1}
  #allocation0 [shape = 'u32[]', space=smem, size = 0x4, offset = 0x4, fixed_abs, tag = 'smem constant byte address 0x4 - core index']
  #allocation1 [shape = 'u32[72,128]{1,0:T(1,128)}', space=vmem, size = 0x9000, scoped, tag = 'internal scratch']
  #allocation2 [shape = 'f32[2,32]{1,0:T(2,128)}', space=vmem, size = 0x400, scoped, tag = 'scratch operand']
  %s0 = inlined_call_operand.hbm [shape: f32[2,8,32], index: 0, kind: input, shape index: {}]
  %s1 = inlined_call_operand.hbm [shape: f32[2,32], index: 1, kind: output, shape index: {}]
  %s2 = sld [smem:[#allocation0]]
  $region26: #{tpu_custom_call.1} parent=0
    _
  %s4 = ssub.s32 1, %s2
  %s5 = scalar_select 0, %s4, %s2
  $region1: #{tpu_custom_call.1} parent=0
    #allocation3 [shape = 'u8[8192]{0}', space=vmem, size = 0x2000, scoped, tag = 'input window, operand 0, single buffered']
    #allocation4 [shape = 's32[1]{0}', space=sflag, size = 0x4, scoped, tag = 'scoped memory for tpu_custom_call.1']
    #allocation5 [shape = 's32[1]{0}', space=sflag, size = 0x4, scoped, tag = 'scoped memory for tpu_custom_call.1']
    #allocation6 [shape = 'u8[1024]{0}', space=vmem, size = 0x400, scoped, tag = 'output window, operand 0, single buffered']
    %6 = vsyncpa [#allocation4], 0
    %7 = vsyncpa [#allocation5], 0
    // Predicated region
    $region2: #{tpu_custom_call.1} parent=1 // pred_check
      _
    $region3: #{tpu_custom_call.1} parent=1 // pred_check_branch
      %9 = sbr.rel (0) target = $region5
    $region4: #{tpu_custom_call.1} parent=1 // pred_region
      %11 = vsyncadd [#allocation4], 0
      %s12 = sshll.u32 %s0, 4
      %s13 = int_to_ptr.hbm [resolvable:$true] %s12
      %s14 = sshll.u32 [#allocation3], 4
      %s15 = int_to_ptr.vmem [resolvable:$true] %s14
      %20 = dma.hbm_to_vmem [thread:$0]  %s13, 256, %s15, [#allocation4], 128, 128, 8
    $region5: #{tpu_custom_call.1} parent=1 // pred_fallthru
      _
    // Predicated region
    $region6: #{tpu_custom_call.1} parent=1 // pred_check
      _
    $region7: #{tpu_custom_call.1} parent=1 // pred_check_branch
      %22 = sbr.rel (0) target = $region9
    $region8: #{tpu_custom_call.1} parent=1 // pred_region
      %24 = dma.done [#allocation4], 256
    $region9: #{tpu_custom_call.1} parent=1 // pred_fallthru
      _
    %p25 = scmp.eq.s32.totalorder 0, 0
    // Predicated region
    $region10: #{tpu_custom_call.1} parent=1 // pred_check
      %p26 = pneg %p25
    $region11: #{tpu_custom_call.1} parent=1 // pred_check_branch
      %28 = sbr.rel (%p26) target = $region13
    $region12: #{tpu_custom_call.1} parent=1 // pred_region
      %vm29 = vcmask 254976
      %30 = vst.msk [vmem:[#allocation2] sm:$0x3] %vm29, 0.0
    $region13: #{tpu_custom_call.1} parent=1 // pred_fallthru
      _
    %v31 = vld [vmem:[#allocation3] sm:$0xff]
    %v32 = vld [vmem:[#allocation3 + $0x8] sm:$0xff]
    %v33 = vld [vmem:[#allocation2] sm:$0x3]
    %vm34 = vcmask 261120
    %v35 = vsel %vm34, %v31, 0.0
    %v36 = vrot.slane %v35, 4
    %v37 = vadd.f32 %v35, %v36
    %v38 = vrot.slane %v37, 2
    %v39 = vadd.f32 %v37, %v38
    %v40 = vrot.slane %v39, 1
    %v41 = vadd.f32 %v39, %v40
    %v42 = vsel %vm34, %v32, 0.0
    %v43 = vrot.slane %v42, 4
    %v44 = vadd.f32 %v42, %v43
    %v45 = vrot.slane %v44, 2
    %v46 = vadd.f32 %v44, %v45
    %v47 = vrot.slane %v46, 1
    %v48 = vadd.f32 %v46, %v47
    %vm51 = vcmask 1041409
    %v52 = vsel %vm51, %v48, %v41
    %v54 = vadd.f32 %v33, %v52
    %vm55 = vcmask 254976
    %56 = vst.msk [vmem:[#allocation2] sm:$0x3] %vm55, %v54
    // Predicated region
    $region14: #{tpu_custom_call.1} parent=1 // pred_check
      %p57 = pneg %p25
    $region15: #{tpu_custom_call.1} parent=1 // pred_check_branch
      %59 = sbr.rel (%p57) target = $region17
    $region16: #{tpu_custom_call.1} parent=1 // pred_region
      %v60 = vld [vmem:[#allocation2] sm:$0x3]
      %v61 = vmul.f32 %v60, 0.125
      %62 = vst.msk [vmem:[#allocation6] sm:$0x3] %vm55, %v61
    $region17: #{tpu_custom_call.1} parent=1 // pred_fallthru
      _
    // Predicated region
    $region18: #{tpu_custom_call.1} parent=1 // pred_check
      _
    $region19: #{tpu_custom_call.1} parent=1 // pred_check_branch
      %64 = sbr.rel (0) target = $region21
    $region20: #{tpu_custom_call.1} parent=1 // pred_region
      %66 = vsyncadd [#allocation5], 0
      %s68 = sshll.u32 [#allocation6], 4
      %s69 = int_to_ptr.vmem [resolvable:$true] %s68
      %s70 = sshll.u32 %s1, 4
      %s71 = int_to_ptr.hbm [resolvable:$true] %s70
      %73 = dma.vmem_to_hbm [thread:$0]  %s69, 32, %s71, [#allocation5]
    $region21: #{tpu_custom_call.1} parent=1 // pred_fallthru
      _
    // Predicated region
    $region22: #{tpu_custom_call.1} parent=1 // pred_check
      _
    $region23: #{tpu_custom_call.1} parent=1 // pred_check_branch
      %75 = sbr.rel (0) target = $region25
    $region24: #{tpu_custom_call.1} parent=1 // pred_region
      %77 = dma.done [#allocation5], 32
    $region25: #{tpu_custom_call.1} parent=1 // pred_fallthru
      _
    %78 = vsyncpa [#allocation4], 1
    %79 = vsyncpa [#allocation5], 1

</llo_original>
